<compile_context>
chip_gen: v6e
topology: v6e:2x2x1
jax: 0.10.0
libtpu: 0.0.40
codegen_flags: <defaults>
</compile_context>

<pallas_src>
import functools

import jax
import jax.numpy as jnp
from jax import lax
from jax.experimental import pallas as pl
from jax.experimental.pallas import tpu as pltpu


def _nonsat_kernel(logits_ref, targets_ref, sum_ref, cnt_ref,
                   acc_sum, acc_cnt, *, hw, tile_hw):
    """One grid step processes a (C, tile_hw) slab of one image's pixels.

    Accumulates per-lane partials of
        sum_i [ -log(1 - softmax(x_i)[t_i] + 1e-12) ]
    and the per-lane count of non-ignored pixels; reduces and writes both
    out on the last grid step.
    """
    n_id = pl.program_id(0)
    t_id = pl.program_id(1)

    @pl.when((n_id == 0) & (t_id == 0))
    def _():
        acc_sum[...] = jnp.zeros_like(acc_sum)
        acc_cnt[...] = jnp.zeros_like(acc_cnt)

    x = logits_ref[0].astype(jnp.float32)            # (C, TP) classes x pixels
    t = targets_ref[0]                               # (1, TP) int32

    # numerically-stable softmax pieces along the class (sublane) axis
    m = jnp.max(x, axis=0, keepdims=True)            # (1, TP)
    e = jnp.exp(x - m)                                # (C, TP)
    denom = jnp.sum(e, axis=0, keepdims=True)        # (1, TP)

    # gather exp(x) at the target class via one-hot select (before log/divide)
    cls = lax.broadcasted_iota(jnp.int32, x.shape, 0)            # (C, TP)
    picked_e = jnp.sum(jnp.where(cls == t, e, 0.0),
                       axis=0, keepdims=True)                    # (1, TP)

    p = picked_e / denom                                         # (1, TP)
    loss = -jnp.log(1.0 - p + 1e-12)                             # (1, TP)

    # validity: not ignore_index, and inside the real pixel range (ragged tile)
    pix = t_id * tile_hw + lax.broadcasted_iota(jnp.int32, t.shape, 1)
    valid = (t != 255) & (pix < hw)                              # (1, TP) bool

    acc_sum[...] += jnp.where(valid, loss, 0.0)
    acc_cnt[...] += valid.astype(jnp.float32)

    @pl.when((n_id == pl.num_programs(0) - 1) &
             (t_id == pl.num_programs(1) - 1))
    def _():
        sum_ref[...] = jnp.sum(acc_sum[...], axis=(0, 1), keepdims=True)
        cnt_ref[...] = jnp.sum(acc_cnt[...], axis=(0, 1), keepdims=True)


@functools.partial(jax.jit, static_argnames=("tile_hw",))
def non_saturating_loss_pallas(logits, targets, tile_hw=2048):
    """logits: (N, C, H, W) float; targets: (N, 1, Ht, Wt) int. Returns scalar f32."""
    N, C, H, W = logits.shape
    tH, tW = targets.shape[2], targets.shape[3]

    # --- glue: bilinear resize (matches F.interpolate align_corners=False) ---
    if (H, W) != (tH, tW):
        logits = jax.image.resize(logits, (N, C, tH, tW), method="bilinear")
        H, W = tH, tW

    HW = H * W

    # Free reshapes on contiguous NCHW memory; keep logits' native dtype
    # (bf16 streams half the HBM bytes; kernel upcasts per-tile).
    x = logits.reshape(N, C, HW)
    t = targets.reshape(N, 1, HW).astype(jnp.int32)

    # Lane-dense tile of pixels: multiple of 128, or the full (small) extent.
    if HW >= 128:
        tile = min(tile_hw, (HW // 128) * 128)
    else:
        tile = HW
    grid = (N, pl.cdiv(HW, tile))

    kernel = functools.partial(_nonsat_kernel, hw=HW, tile_hw=tile)

    loss_sum, loss_cnt = pl.pallas_call(
        kernel,
        out_shape=(
            jax.ShapeDtypeStruct((1, 1), jnp.float32),
            jax.ShapeDtypeStruct((1, 1), jnp.float32),
        ),
        grid_spec=pltpu.PrefetchScalarGridSpec(
            num_scalar_prefetch=0,
            grid=grid,
            in_specs=[
                pl.BlockSpec((1, C, tile), lambda n, i: (n, 0, i)),
                pl.BlockSpec((1, 1, tile), lambda n, i: (n, 0, i)),
            ],
            out_specs=[
                pl.BlockSpec((1, 1), lambda n, i: (0, 0)),
                pl.BlockSpec((1, 1), lambda n, i: (0, 0)),
            ],
            scratch_shapes=[
                pltpu.VMEM((1, tile), jnp.float32),
                pltpu.VMEM((1, tile), jnp.float32),
            ],
        ),
        compiler_params=pltpu.CompilerParams(
            # Both axes feed a single shared accumulator/output block, so both
            # must stay "arbitrary" (no megacore sharding of the accumulator).
            dimension_semantics=("arbitrary", "arbitrary"),
        ),
    )(x, t)

    # NOTE: if every pixel is ignore_index=255 this is 0/0 = NaN, matching the
    # PyTorch reference behaviour.
    return loss_sum[0, 0] / loss_cnt[0, 0]


class NonSaturatingLoss:
    """Mirror of the PyTorch module (epsilon=0 path)."""

    def __init__(self, epsilon=0):
        self.epsilon = epsilon

    def __call__(self, logits, targets):
        # TODO(synk): epsilon > 0 smoothing branch not implemented (see header).
        return non_saturating_loss_pallas(logits, targets)


def _reference(logits, targets):
    """Plain-JAX reference of the PyTorch forward (epsilon=0).

    Note: target index 255 must be clamped before take_along_axis -- JAX's
    default out-of-bounds gather mode fills with NaN, which poisoned the sum
    even though those pixels are masked (this was the previous test failure).
    """
    N, C, H, W = logits.shape
    tH, tW = targets.shape[2], targets.shape[3]
    if (H, W) != (tH, tW):
        logits = jax.image.resize(logits, (N, C, tH, tW), method="bilinear")
    t = targets[:, 0]                                    # (N, H, W)
    probs = jax.nn.softmax(logits.astype(jnp.float32), axis=1)
    logp = jnp.log(1.0 - probs + 1e-12)                  # (N, C, H, W)
    t_safe = jnp.where(t == 255, 0, t)
    picked = jnp.take_along_axis(logp, t_safe[:, None], axis=1)[:, 0]  # (N,H,W)
    valid = t != 255
    return (jnp.sum(jnp.where(valid, -picked, 0.0))
            / jnp.sum(valid.astype(jnp.float32)))


if __name__ == "__main__":
    key = jax.random.PRNGKey(0)
    k1, k2, k3 = jax.random.split(key, 3)

    N, C, H, W = 2, 4, 16, 16
    logits = jax.random.normal(k1, (N, C, H, W), dtype=jnp.float32)
    targets = jax.random.randint(k2, (N, 1, H, W), 0, C, dtype=jnp.int32)
    # sprinkle some ignore_index=255 pixels
    ignore_mask = jax.random.bernoulli(k3, 0.1, (N, 1, H, W))
    targets = jnp.where(ignore_mask, jnp.int32(255), targets)

    loss_fn = NonSaturatingLoss(epsilon=0)
    loss = loss_fn(logits, targets)
    jax.block_until_ready(loss)

    ref = _reference(logits, targets)
    assert jnp.allclose(loss, ref, rtol=1e-5, atol=1e-5), (loss, ref)

    print("KERNEL_OK")
</pallas_src>

<mosaic_0001>
module attributes {stable_mosaic.version = 11 : i64} {
  func.func @_nonsat_kernel(%arg0: i32, %arg1: i32, %arg2: memref<1x4x256xf32, #tpu.memory_space<vmem>>, %arg3: memref<1x1x256xi32, #tpu.memory_space<vmem>>, %arg4: memref<1x1xf32, #tpu.memory_space<vmem>>, %arg5: memref<1x1xf32, #tpu.memory_space<vmem>>, %arg6: memref<1x256xf32, #tpu.memory_space<vmem>>, %arg7: memref<1x256xf32, #tpu.memory_space<vmem>>) attributes {dimension_semantics = [#tpu.dimension_semantics<arbitrary>, #tpu.dimension_semantics<arbitrary>], iteration_bounds = array<i64: 2, 1>, scalar_prefetch = 0 : i64, scratch_operands = 2 : i64, tpu.core_type = #tpu.core_type<tc>, window_params = [{transform_indices = @transform_0, window_bounds = array<i64: 1, 4, 256>}, {transform_indices = @transform_1, window_bounds = array<i64: 1, 1, 256>}, {pipeline_mode = #tpu.pipeline_mode<synchronous>, transform_indices = @transform_2, window_bounds = array<i64: 1, 1>}, {pipeline_mode = #tpu.pipeline_mode<synchronous>, transform_indices = @transform_3, window_bounds = array<i64: 1, 1>}]} {
    %c0_i32 = arith.constant 0 : i32
    %0 = arith.cmpi eq, %arg0, %c0_i32 : i32
    %c0_i32_0 = arith.constant 0 : i32
    %1 = arith.cmpi eq, %arg1, %c0_i32_0 : i32
    %2 = arith.andi %0, %1 : i1
    %3 = arith.extui %2 : i1 to i32
    %c0_i32_1 = arith.constant 0 : i32
    %4 = arith.cmpi ne, %3, %c0_i32_1 : i32
    scf.if %4 {
      %cst_25 = arith.constant 0.000000e+00 : f32
      %55 = vector.broadcast %cst_25 : f32 to vector<1x256xf32>
      %c0_26 = arith.constant 0 : index
      %c0_27 = arith.constant 0 : index
      %56 = vector.load %arg6[%c0_26, %c0_27] : memref<1x256xf32, #tpu.memory_space<vmem>>, vector<1x256xf32>
      tpu.vector_store %arg6[%c0_26, %c0_27], %55 {strides = array<i32>} : memref<1x256xf32, #tpu.memory_space<vmem>>, vector<1x256xf32>,
      %cst_28 = arith.constant 0.000000e+00 : f32
      %57 = vector.broadcast %cst_28 : f32 to vector<1x256xf32>
      %c0_29 = arith.constant 0 : index
      %c0_30 = arith.constant 0 : index
      %58 = vector.load %arg7[%c0_29, %c0_30] : memref<1x256xf32, #tpu.memory_space<vmem>>, vector<1x256xf32>
      tpu.vector_store %arg7[%c0_29, %c0_30], %57 {strides = array<i32>} : memref<1x256xf32, #tpu.memory_space<vmem>>, vector<1x256xf32>,
    } else {
    }
    %c0 = arith.constant 0 : index
    %c0_2 = arith.constant 0 : index
    %c0_3 = arith.constant 0 : index
    %5 = vector.load %arg2[%c0, %c0_2, %c0_3] : memref<1x4x256xf32, #tpu.memory_space<vmem>>, vector<1x4x256xf32>
    %6 = vector.shape_cast %5 : vector<1x4x256xf32> to vector<4x256xf32>
    %c0_4 = arith.constant 0 : index
    %c0_5 = arith.constant 0 : index
    %c0_6 = arith.constant 0 : index
    %7 = vector.load %arg3[%c0_4, %c0_5, %c0_6] : memref<1x1x256xi32, #tpu.memory_space<vmem>>, vector<1x1x256xi32>
    %8 = vector.shape_cast %7 : vector<1x1x256xi32> to vector<1x256xi32>
    %cst = arith.constant dense<0xFF800000> : vector<256xf32>
    %9 = vector.multi_reduction <maximumf>, %6, %cst [0] : vector<4x256xf32> to vector<256xf32>
    %10 = vector.shape_cast %9 : vector<256xf32> to vector<1x256xf32>
    %11 = vector.broadcast %10 : vector<1x256xf32> to vector<4x256xf32>
    %12 = arith.subf %6, %11 : vector<4x256xf32>
    %13 = math.exp %12 : vector<4x256xf32>
    %cst_7 = arith.constant dense<0.000000e+00> : vector<256xf32>
    %14 = vector.multi_reduction <add>, %13, %cst_7 [0] : vector<4x256xf32> to vector<256xf32>
    %15 = vector.shape_cast %14 : vector<256xf32> to vector<1x256xf32>
    %16 = tpu.iota {dimensions = array<i32: 0>} : vector<4x256xi32>
    %17 = vector.broadcast %8 : vector<1x256xi32> to vector<4x256xi32>
    %18 = arith.cmpi eq, %16, %17 : vector<4x256xi32>
    %cst_8 = arith.constant 0.000000e+00 : f32
    %19 = vector.broadcast %cst_8 : f32 to vector<4x256xf32>
    %20 = arith.select %18, %13, %19 : vector<4x256xi1>, vector<4x256xf32>
    %cst_9 = arith.constant dense<0.000000e+00> : vector<256xf32>
    %21 = vector.multi_reduction <add>, %20, %cst_9 [0] : vector<4x256xf32> to vector<256xf32>
    %22 = vector.shape_cast %21 : vector<256xf32> to vector<1x256xf32>
    %23 = arith.divf %22, %15 : vector<1x256xf32>
    %cst_10 = arith.constant 1.000000e+00 : f32
    %24 = vector.broadcast %cst_10 : f32 to vector<1x256xf32>
    %25 = arith.subf %24, %23 : vector<1x256xf32>
    %cst_11 = arith.constant 9.99999996E-13 : f32
    %26 = vector.broadcast %cst_11 : f32 to vector<1x256xf32>
    %27 = arith.addf %25, %26 : vector<1x256xf32>
    %28 = math.log %27 : vector<1x256xf32>
    %cst_12 = arith.constant 0.000000e+00 : f32
    %29 = vector.broadcast %cst_12 : f32 to vector<1x256xf32>
    %30 = arith.subf %29, %28 : vector<1x256xf32>
    %c256_i32 = arith.constant 256 : i32
    %31 = arith.muli %arg1, %c256_i32 : i32
    %32 = tpu.iota {dimensions = array<i32: 1>} : vector<1x256xi32>
    %33 = vector.broadcast %31 : i32 to vector<1x256xi32>
    %34 = arith.addi %33, %32 : vector<1x256xi32>
    %c255_i32 = arith.constant 255 : i32
    %35 = vector.broadcast %c255_i32 : i32 to vector<1x256xi32>
    %36 = arith.cmpi ne, %8, %35 : vector<1x256xi32>
    %c256_i32_13 = arith.constant 256 : i32
    %37 = vector.broadcast %c256_i32_13 : i32 to vector<1x256xi32>
    %38 = arith.cmpi slt, %34, %37 : vector<1x256xi32>
    %39 = arith.andi %36, %38 : vector<1x256xi1>
    %c0_14 = arith.constant 0 : index
    %c0_15 = arith.constant 0 : index
    %40 = vector.load %arg6[%c0_14, %c0_15] : memref<1x256xf32, #tpu.memory_space<vmem>>, vector<1x256xf32>
    %cst_16 = arith.constant 0.000000e+00 : f32
    %41 = vector.broadcast %cst_16 : f32 to vector<1x256xf32>
    %42 = arith.select %39, %30, %41 : vector<1x256xi1>, vector<1x256xf32>
    %43 = arith.addf %40, %42 : vector<1x256xf32>
    %c0_17 = arith.constant 0 : index
    %c0_18 = arith.constant 0 : index
    %44 = vector.load %arg6[%c0_17, %c0_18] : memref<1x256xf32, #tpu.memory_space<vmem>>, vector<1x256xf32>
    tpu.vector_store %arg6[%c0_17, %c0_18], %43 {strides = array<i32>} : memref<1x256xf32, #tpu.memory_space<vmem>>, vector<1x256xf32>,
    %c0_19 = arith.constant 0 : index
    %c0_20 = arith.constant 0 : index
    %45 = vector.load %arg7[%c0_19, %c0_20] : memref<1x256xf32, #tpu.memory_space<vmem>>, vector<1x256xf32>
    %46 = arith.extui %39 : vector<1x256xi1> to vector<1x256xi32>
    %47 = arith.sitofp %46 : vector<1x256xi32> to vector<1x256xf32>
    %48 = arith.addf %45, %47 : vector<1x256xf32>
    %c0_21 = arith.constant 0 : index
    %c0_22 = arith.constant 0 : index
    %49 = vector.load %arg7[%c0_21, %c0_22] : memref<1x256xf32, #tpu.memory_space<vmem>>, vector<1x256xf32>
    tpu.vector_store %arg7[%c0_21, %c0_22], %48 {strides = array<i32>} : memref<1x256xf32, #tpu.memory_space<vmem>>, vector<1x256xf32>,
    %c1_i32 = arith.constant 1 : i32
    %50 = arith.cmpi eq, %arg0, %c1_i32 : i32
    %c0_i32_23 = arith.constant 0 : i32
    %51 = arith.cmpi eq, %arg1, %c0_i32_23 : i32
    %52 = arith.andi %50, %51 : i1
    %53 = arith.extui %52 : i1 to i32
    %c0_i32_24 = arith.constant 0 : i32
    %54 = arith.cmpi ne, %53, %c0_i32_24 : i32
    scf.if %54 {
      %c0_25 = arith.constant 0 : index
      %c0_26 = arith.constant 0 : index
      %55 = vector.load %arg6[%c0_25, %c0_26] : memref<1x256xf32, #tpu.memory_space<vmem>>, vector<1x256xf32>
      %56 = vector.shape_cast %55 : vector<1x256xf32> to vector<1x1x256xf32>
      %cst_27 = arith.constant dense<0.000000e+00> : vector<1xf32>
      %57 = vector.multi_reduction <add>, %56, %cst_27 [1, 2] : vector<1x1x256xf32> to vector<1xf32>
      %58 = vector.shape_cast %57 : vector<1xf32> to vector<1x1x1xf32>
      %59 = vector.extract %58[0, 0, 0] : f32 from vector<1x1x1xf32>
      %60 = vector.broadcast %59 : f32 to vector<1x1xf32>
      %c0_28 = arith.constant 0 : index
      %c0_29 = arith.constant 0 : index
      %61 = vector.load %arg4[%c0_28, %c0_29] : memref<1x1xf32, #tpu.memory_space<vmem>>, vector<1x1xf32>
      tpu.vector_store %arg4[%c0_28, %c0_29], %60 {strides = array<i32>} : memref<1x1xf32, #tpu.memory_space<vmem>>, vector<1x1xf32>,
      %c0_30 = arith.constant 0 : index
      %c0_31 = arith.constant 0 : index
      %62 = vector.load %arg7[%c0_30, %c0_31] : memref<1x256xf32, #tpu.memory_space<vmem>>, vector<1x256xf32>
      %63 = vector.shape_cast %62 : vector<1x256xf32> to vector<1x1x256xf32>
      %cst_32 = arith.constant dense<0.000000e+00> : vector<1xf32>
      %64 = vector.multi_reduction <add>, %63, %cst_32 [1, 2] : vector<1x1x256xf32> to vector<1xf32>
      %65 = vector.shape_cast %64 : vector<1xf32> to vector<1x1x1xf32>
      %66 = vector.extract %65[0, 0, 0] : f32 from vector<1x1x1xf32>
      %67 = vector.broadcast %66 : f32 to vector<1x1xf32>
      %c0_33 = arith.constant 0 : index
      %c0_34 = arith.constant 0 : index
      %68 = vector.load %arg5[%c0_33, %c0_34] : memref<1x1xf32, #tpu.memory_space<vmem>>, vector<1x1xf32>
      tpu.vector_store %arg5[%c0_33, %c0_34], %67 {strides = array<i32>} : memref<1x1xf32, #tpu.memory_space<vmem>>, vector<1x1xf32>,
    } else {
    }
    return
  }
  func.func @transform_0(%arg0: i32, %arg1: i32) -> (i32, i32, i32) {
    %c0_i32 = arith.constant 0 : i32
    %c0_i32_0 = arith.constant 0 : i32
    return %arg0, %c0_i32, %arg1 : i32, i32, i32
  }
  func.func @transform_1(%arg0: i32, %arg1: i32) -> (i32, i32, i32) {
    %c0_i32 = arith.constant 0 : i32
    %c0_i32_0 = arith.constant 0 : i32
    return %arg0, %c0_i32, %arg1 : i32, i32, i32
  }
  func.func @transform_2(%arg0: i32, %arg1: i32) -> (i32, i32) {
    %c0_i32 = arith.constant 0 : i32
    %c0_i32_0 = arith.constant 0 : i32
    %c0_i32_1 = arith.constant 0 : i32
    return %c0_i32, %c0_i32_0 : i32, i32
  }
  func.func @transform_3(%arg0: i32, %arg1: i32) -> (i32, i32) {
    %c0_i32 = arith.constant 0 : i32
    %c0_i32_0 = arith.constant 0 : i32
    %c0_i32_1 = arith.constant 0 : i32
    return %c0_i32, %c0_i32_0 : i32, i32
  }
}

</mosaic_0001>

<llo_original>
// kernel: non_saturating_loss_pallas.1
$region0: #{non_saturating_loss_pallas.1}
  #allocation0 [shape = 'u32[]', space=smem, size = 0x4, offset = 0x4, fixed_abs, tag = 'smem constant byte address 0x4 - core index']
  #allocation1 [shape = 'u32[144,128]{1,0:T(1,128)}', space=vmem, size = 0x12000, scoped, tag = 'internal scratch']
  #allocation2 [shape = 'f32[1,256]{1,0:T(1,128)}', space=vmem, size = 0x400, scoped, tag = 'scratch operand']
  #allocation3 [shape = 'f32[1,256]{1,0:T(1,128)}', space=vmem, size = 0x400, scoped, tag = 'scratch operand']
  %s0 = inlined_call_operand.vmem [shape: f32[2,4,256], index: 0, kind: input, shape index: {}]
  %s1 = inlined_call_operand.vmem [shape: s32[2,1,256], index: 1, kind: input, shape index: {}]
  %s2 = inlined_call_operand.hbm [shape: f32[1,1], index: 2, kind: output, shape index: {0}]
  %s3 = inlined_call_operand.hbm [shape: f32[1,1], index: 3, kind: output, shape index: {1}]
  %4 = xla_tuple %s2, %s3
  %s5 = sld [smem:[#allocation0]]
  $region57: #{non_saturating_loss_pallas.1} parent=0
    _
  %s7 = ssub.s32 1, %s5
  %s8 = scalar_select 0, %s7, %s5
  $region1: #{non_saturating_loss_pallas.1} parent=0
    #allocation4 [shape = 'u8[512]{0}', space=vmem, size = 0x400, scoped, tag = 'output window, operand 0, single buffered']
    #allocation5 [shape = 's32[2]{0}', space=sflag, size = 0x8, scoped, tag = 'scoped memory for non_saturating_loss_pallas.1']
    #allocation6 [shape = 'u8[512]{0}', space=vmem, size = 0x400, scoped, tag = 'output window, operand 1, single buffered']
    #allocation7 [shape = 's32[1]{0}', space=sflag, size = 0x4, scoped, tag = 'scoped memory for non_saturating_loss_pallas.1']
    %9 = vsyncpa [#allocation5], 0
    %10 = vsyncpa [#allocation7], 0
    loop: start=0, step=1, limit=4
    $region2: #{non_saturating_loss_pallas.1} parent=1 // loop_pre_header
      _
    $region3: #{non_saturating_loss_pallas.1} parent=1 // loop_header
      %s12 = sphi 0, %s16
      %p13 = scmp.ge.s32.totalorder %s12, 4
      %s19 = sphi 0, %s31
      %s20 = sphi 0, %s27
      %s21 = sphi 0, %s19
      %s22 = sphi 0, %s20
      %s23 = sphi 0, %s21
      %s24 = sphi 0, %s22
      %s36 = sphi 0, %s38
      %s39 = sphi 0, %s36
      %s40 = sphi 0, %s39
      %s56 = sphi 0, %s40
      %s64 = sphi 0, %s66
      %s67 = sphi 0, %s64
      %s68 = sphi 0, %s67
      %s84 = sphi 0, %s68
      %s88 = sphi 0, %s88
      %s90 = sphi 0, %s88
      %s91 = sphi 0, %s90
      %s105 = sphi 0, %s91
      %s109 = sphi 0, %s109
      %s111 = sphi 0, %s109
      %s112 = sphi 0, %s111
      %s126 = sphi 0, %s112
    $region4: #{non_saturating_loss_pallas.1} parent=1 // loop_header_branch
      %15 = sbr.rel (%p13) target = $region8
    $region5: #{non_saturating_loss_pallas.1} parent=1 // loop_body
      %s17 = ssub.s32 %s12, 1
      %s18 = ssub.s32 %s12, 2
      %s25 = sadd.s32 1, %s20
      %p26 = scmp.ge.s32.totalorder %s25, 1
      %s27 = scalar_select %p26, 0, %s25
      %s28 = sadd.s32 1, %s19
      %s29 = scalar_select %p26, %s28, %s19
      %p30 = scmp.ge.s32.totalorder %s29, 2
      %s31 = scalar_select %p30, 0, %s29
      %s32 = ssub.s32 %s19, %s31
      %s33 = ssub.s32 %s20, %s27
      %s34 = sor.u32 %s32, %s33
      %p35 = scmp.eq.s32.totalorder %s34, 0
      %s37 = sadd.s32 %s36, 1
      %s38 = scalar_select %p35, %s36, %s37
      %p41 = pneg %p35
      %p42 = scmp.eq.s32.totalorder %s12, 1
      %p43 = por %p41, %p42
      %p44 = scmp.ne.s32.totalorder %s36, %s39
      %p45 = scmp.eq.s32.totalorder %s12, 0
      %p46 = por %p44, %p45
      %p47 = scmp.ne.s32.totalorder %s36, %s39
      %p48 = scmp.eq.s32.totalorder %s17, 1
      %p49 = por %p47, %p48
      %p50 = scmp.ne.s32.totalorder %s39, %s40
      %p51 = scmp.eq.s32.totalorder %s17, 0
      %p52 = por %p50, %p51
      %p53 = scmp.ne.s32.totalorder %s39, %s40
      %p54 = scmp.eq.s32.totalorder %s18, 1
      %p55 = por %p53, %p54
      %p57 = scmp.ne.s32.totalorder %s40, %s56
      %p58 = scmp.eq.s32.totalorder %s18, 0
      %p59 = por %p57, %p58
      %s60 = ssub.s32 %s19, %s31
      %s61 = ssub.s32 %s20, %s27
      %s62 = sor.u32 %s60, %s61
      %p63 = scmp.eq.s32.totalorder %s62, 0
      %s65 = sadd.s32 %s64, 1
      %s66 = scalar_select %p63, %s64, %s65
      %p69 = pneg %p63
      %p70 = scmp.eq.s32.totalorder %s12, 1
      %p71 = por %p69, %p70
      %p72 = scmp.ne.s32.totalorder %s64, %s67
      %p73 = scmp.eq.s32.totalorder %s12, 0
      %p74 = por %p72, %p73
      %p75 = scmp.ne.s32.totalorder %s64, %s67
      %p76 = scmp.eq.s32.totalorder %s17, 1
      %p77 = por %p75, %p76
      %p78 = scmp.ne.s32.totalorder %s67, %s68
      %p79 = scmp.eq.s32.totalorder %s17, 0
      %p80 = por %p78, %p79
      %p81 = scmp.ne.s32.totalorder %s67, %s68
      %p82 = scmp.eq.s32.totalorder %s18, 1
      %p83 = por %p81, %p82
      %p85 = scmp.ne.s32.totalorder %s68, %s84
      %p86 = scmp.eq.s32.totalorder %s18, 0
      %p87 = por %p85, %p86
      %s89 = sadd.s32 %s88, 1
      %p92 = scmp.eq.s32.totalorder %s12, 1
      %p93 = scmp.ne.s32.totalorder %s88, %s90
      %p94 = scmp.eq.s32.totalorder %s12, 0
      %p95 = por %p93, %p94
      %p96 = scmp.ne.s32.totalorder %s88, %s90
      %p97 = scmp.eq.s32.totalorder %s17, 1
      %p98 = por %p96, %p97
      %p99 = scmp.ne.s32.totalorder %s90, %s91
      %p100 = scmp.eq.s32.totalorder %s17, 0
      %p101 = por %p99, %p100
      %p102 = scmp.ne.s32.totalorder %s90, %s91
      %p103 = scmp.eq.s32.totalorder %s18, 1
      %p104 = por %p102, %p103
      %p106 = scmp.ne.s32.totalorder %s91, %s105
      %p107 = scmp.eq.s32.totalorder %s18, 0
      %p108 = por %p106, %p107
      %s110 = sadd.s32 %s109, 1
      %p113 = scmp.eq.s32.totalorder %s12, 1
      %p114 = scmp.ne.s32.totalorder %s109, %s111
      %p115 = scmp.eq.s32.totalorder %s12, 0
      %p116 = por %p114, %p115
      %p117 = scmp.ne.s32.totalorder %s109, %s111
      %p118 = scmp.eq.s32.totalorder %s17, 1
      %p119 = por %p117, %p118
      %p120 = scmp.ne.s32.totalorder %s111, %s112
      %p121 = scmp.eq.s32.totalorder %s17, 0
      %p122 = por %p120, %p121
      %p123 = scmp.ne.s32.totalorder %s111, %s112
      %p124 = scmp.eq.s32.totalorder %s18, 1
      %p125 = por %p123, %p124
      %p127 = scmp.ne.s32.totalorder %s112, %s126
      %p128 = scmp.eq.s32.totalorder %s18, 0
      %p129 = por %p127, %p128
      %p130 = scmp.le.s32.totalorder 1, %s12
      %p131 = scmp.lt.s32.totalorder %s12, 3
      %p132 = pnand %p130, %p131
      %p133 = pneg %p132
      // Predicated region
      $region9: #{non_saturating_loss_pallas.1} parent=5 // pred_check
        _
      $region10: #{non_saturating_loss_pallas.1} parent=5 // pred_check_branch
        %135 = sbr.rel (%p132) target = $region12
      $region11: #{non_saturating_loss_pallas.1} parent=5 // pred_region
        %s136 = ssub.s32 %s12, 1
      $region12: #{non_saturating_loss_pallas.1} parent=5 // pred_fallthru
        _
      %p137 = scmp.lt.s32.totalorder %s12, 2
      // Predicated region
      $region13: #{non_saturating_loss_pallas.1} parent=5 // pred_check
        %p138 = pneg %p137
      $region14: #{non_saturating_loss_pallas.1} parent=5 // pred_check_branch
        %140 = sbr.rel (%p138) target = $region16
      $region15: #{non_saturating_loss_pallas.1} parent=5 // pred_region
        // Predicated region
        $region17: #{non_saturating_loss_pallas.1} parent=15 // pred_check
          %p141 = pneg %p46
        $region18: #{non_saturating_loss_pallas.1} parent=15 // pred_check_branch
          %143 = sbr.rel (%p141) target = $region20
        $region19: #{non_saturating_loss_pallas.1} parent=15 // pred_region
          %s144 = smul.u32 2, %s20
          %p145 = scmp.lt.s32.totalorder %s19, 1
          %s146 = scalar_select %p145, %s19, 1
          %p147 = scmp.lt.s32.totalorder %s144, 1
          %s148 = scalar_select %p147, %s144, 1
          %s149 = smul.addr %s146, 2
          %s150 = sadd.s32 %s148, %s149
          %s151 = smul.addr %s150, 4
          %s152 = scalar_lea.vmem %s0, %s151
          %s153 = smul.u32 2, %s20
        $region20: #{non_saturating_loss_pallas.1} parent=15 // pred_fallthru
          _
        // Predicated region
        $region21: #{non_saturating_loss_pallas.1} parent=15 // pred_check
          %p154 = pneg %p74
        $region22: #{non_saturating_loss_pallas.1} parent=15 // pred_check_branch
          %156 = sbr.rel (%p154) target = $region24
        $region23: #{non_saturating_loss_pallas.1} parent=15 // pred_region
          %s157 = smul.u32 2, %s20
          %p158 = scmp.lt.s32.totalorder %s19, 1
          %s159 = scalar_select %p158, %s19, 1
          %p160 = scmp.lt.s32.totalorder %s157, 1
          %s161 = scalar_select %p160, %s157, 1
          %s162 = smul.addr %s159, 2
          %s163 = sadd.s32 %s161, %s162
          %s164 = scalar_lea.vmem %s1, %s163
          %s165 = smul.u32 2, %s20
        $region24: #{non_saturating_loss_pallas.1} parent=15 // pred_fallthru
          _
      $region16: #{non_saturating_loss_pallas.1} parent=5 // pred_fallthru
        _
      %p166 = scmp.le.s32.totalorder 1, %s12
      %p167 = scmp.lt.s32.totalorder %s12, 3
      %p168 = pnand %p166, %p167
      %p169 = pneg %p168
      // Predicated region
      $region25: #{non_saturating_loss_pallas.1} parent=5 // pred_check
        _
      $region26: #{non_saturating_loss_pallas.1} parent=5 // pred_check_branch
        %171 = sbr.rel (%p168) target = $region28
      $region27: #{non_saturating_loss_pallas.1} parent=5 // pred_region
        %s172 = ssub.s32 %s12, 1
        %s173 = smul.u32 2, %s22
        %p174 = scmp.lt.s32.totalorder %s21, 1
        %s175 = scalar_select %p174, %s21, 1
        %p176 = scmp.lt.s32.totalorder %s173, 1
        %s177 = scalar_select %p176, %s173, 1
        %s178 = smul.addr %s175, 2
        %s179 = sadd.s32 %s177, %s178
        %s180 = smul.addr %s179, 4
        %s181 = scalar_lea.vmem %s0, %s180
        %p182 = pneg %p52
        %p183 = pneg %p49
        %s184 = smul.u32 2, %s22
        %p185 = scmp.lt.s32.totalorder %s21, 1
        %s186 = scalar_select %p185, %s21, 1
        %p187 = scmp.lt.s32.totalorder %s184, 1
        %s188 = scalar_select %p187, %s184, 1
        %s189 = smul.addr %s186, 2
        %s190 = sadd.s32 %s188, %s189
        %s191 = scalar_lea.vmem %s1, %s190
        %p192 = pneg %p80
        %p193 = pneg %p77
        %p194 = pneg %p101
        %p195 = pneg %p98
        %p196 = pneg %p122
        %p197 = pneg %p119
        %s198 = smul.u32 2, %s22
        %p199 = scmp.lt.s32.totalorder %s21, 1
        %s200 = scalar_select %p199, %s21, 1
        %p201 = scmp.lt.s32.totalorder %s198, 1
        %s202 = scalar_select %p201, %s198, 1
        %s203 = smul.addr %s200, 2
        %s204 = sadd.s32 %s202, %s203
        %s205 = smul.addr %s204, 4
        %s206 = scalar_lea.vmem %s0, %s205
        %s207 = smul.u32 2, %s22
        %s208 = smul.u32 2, %s22
        %p209 = scmp.lt.s32.totalorder %s21, 1
        %s210 = scalar_select %p209, %s21, 1
        %p211 = scmp.lt.s32.totalorder %s208, 1
        %s212 = scalar_select %p211, %s208, 1
        %s213 = smul.addr %s210, 2
        %s214 = sadd.s32 %s212, %s213
        %s215 = scalar_lea.vmem %s1, %s214
        %s216 = smul.u32 2, %s22
        %p217 = scmp.eq.s32.totalorder %s21, 0
        %p218 = scmp.eq.s32.totalorder %s22, 0
        %p219 = pnand %p217, %p218
        %p220 = pneg %p219
        // Predicated region
        $region29: #{non_saturating_loss_pallas.1} parent=27 // pred_check
          _
        $region30: #{non_saturating_loss_pallas.1} parent=27 // pred_check_branch
          %222 = sbr.rel (%p219) target = $region32
        $region31: #{non_saturating_loss_pallas.1} parent=27 // pred_region
          %v223 = vlaneseq
          %vm224 = vcmp.ge.s32.totalorder %v223, 0
          %vm225 = vcmp.lt.s32.totalorder %v223, 256
          %vm226 = vmand %vm224, %vm225
          %227 = vst.msk [vmem:[#allocation2] sm:$0x3] %vm226, 0.0
          %228 = vst.msk [vmem:[#allocation3] sm:$0x3] %vm226, 0.0
        $region32: #{non_saturating_loss_pallas.1} parent=27 // pred_fallthru
          _
        %v229 = vld [vmem:[%s206] sm:$0xff]
        %v230 = vld [vmem:[%s215] sm:$0x3]
        %v232 = vcombine.high %v229, %v229
        %vm234 = vcmask 1043456
        %v235 = vsel %vm234, %v229, -inf
        %v236 = vrot.slane %v235, 4
        %v237 = vmax.f32 %v235, %v236
        %v238 = vrot.slane %v237, 2
        %v239 = vmax.f32 %v237, %v238
        %v240 = vrot.slane %v239, 1
        %v241 = vmax.f32 %v239, %v240
        %v242 = vsel %vm234, %v232, -inf
        %v243 = vrot.slane %v242, 4
        %v244 = vmax.f32 %v242, %v243
        %v245 = vrot.slane %v244, 2
        %v246 = vmax.f32 %v244, %v245
        %v247 = vrot.slane %v246, 1
        %v248 = vmax.f32 %v246, %v247
        %v251 = vcombine.low %v241, %v248
        %v253 = vsub.f32 %v229, %v251
        %v254 = vmul.f32 %v253, 1.442695
        %v255 = vpow.pop %v254
        %v257 = vcombine.high %v255, %v255
        %v259 = vsel %vm234, %v255, 0.0
        %v260 = vrot.slane %v259, 4
        %v261 = vadd.f32 %v259, %v260
        %v262 = vrot.slane %v261, 2
        %v263 = vadd.f32 %v261, %v262
        %v264 = vrot.slane %v263, 1
        %v265 = vadd.f32 %v263, %v264
        %v266 = vsel %vm234, %v257, 0.0
        %v267 = vrot.slane %v266, 4
        %v268 = vadd.f32 %v266, %v267
        %v269 = vrot.slane %v268, 2
        %v270 = vadd.f32 %v268, %v269
        %v271 = vrot.slane %v270, 1
        %v272 = vadd.f32 %v270, %v271
        %v273 = vlaneseq
        %v274 = vshrl.u32 %v273, 7
        %v275 = vlaneseq
        %v276 = vshrl.u32 %v275, 7
        %v277 = vsub.s32 0, %v276
        %v278 = vrot.slane %v230, %v277
        %v279 = vlaneseq
        %v280 = vshrl.u32 %v279, 7
        %v281 = vsub.s32 1, %v280
        %v282 = vrot.slane %v230, %v281
        %vm283 = vcmp.eq.s32.totalorder %v274, %v278
        %vm284 = vcmp.eq.s32.totalorder %v274, %v282
        %v285 = vsel %vm283, %v255, 0.0
        %v286 = vsel %vm284, %v257, 0.0
        %v287 = vsel %vm234, %v285, 0.0
        %v288 = vrot.slane %v287, 4
        %v289 = vadd.f32 %v287, %v288
        %v290 = vrot.slane %v289, 2
        %v291 = vadd.f32 %v289, %v290
        %v292 = vrot.slane %v291, 1
        %v293 = vadd.f32 %v291, %v292
        %v294 = vsel %vm234, %v286, 0.0
        %v295 = vrot.slane %v294, 4
        %v296 = vadd.f32 %v294, %v295
        %v297 = vrot.slane %v296, 2
        %v298 = vadd.f32 %v296, %v297
        %v299 = vrot.slane %v298, 1
        %v300 = vadd.f32 %v298, %v299
        %v301 = vrcp.pop %v265
        %v302 = vmul.f32 %v293, %v301
        %v303 = vrcp.pop %v272
        %v304 = vmul.f32 %v300, %v303
        %v305 = vsub.f32 1.0, %v302
        %v306 = vsub.f32 1.0, %v304
        %v307 = vadd.f32 %v305, 1e-12
        %v308 = vadd.f32 %v306, 1e-12
        %v309 = vlog2.pop %v307
        %v310 = vmul.f32 %v309, 0.6931472
        %v311 = vlog2.pop %v308
        %v312 = vmul.f32 %v311, 0.6931472
        %v313 = vsub.f32 0.0, %v310
        %v314 = vsub.f32 0.0, %v312
        %s315 = smul.u32 %s22, 256
        %v316 = vlaneseq
        %v317 = vand.u32 %v316, 127
        %v318 = vadd.s32 %v317, 128
        %v319 = vstv %s315
        %v320 = vadd.s32 %v319, %v317
        %v321 = vadd.s32 %v319, %v318
        %vm322 = vcmp.ne.s32.totalorder %v230, 255
        %vm323 = vcmp.lt.s32.totalorder %v320, 256
        %vm324 = vcmp.lt.s32.totalorder %v321, 256
        %v325 = vsel %vm323, 1, 0
        %v326 = vsel %vm324, 1, 0
        %v327 = vcombine.low %v325, %v326
        %v329 = vunpack.c.l.s4 1966171168
        %v330 = vunpack.c.0.s8 %v329
        %v331 = vlaneseq
        %v332 = vshrl.u32 %v331, 7
        %v333 = vsub.s32 %v330, %v332
        %v334 = vrot.slane %v327, %v333
        %v336 = vunpack.c.l.s4 1966171168
        %v337 = vunpack.c.0.s8 %v336
        %v338 = vlaneseq
        %v339 = vshrl.u32 %v338, 7
        %v340 = vsub.s32 %v337, %v339
        %v341 = vrot.slane %v334, %v340
        %vm342 = vcmp.ne.s32.totalorder %v341, 0
        %vm343 = vmand %vm322, %vm342
        %v344 = vld [vmem:[#allocation2] sm:$0x3]
        %v347 = vcombine.low %v313, %v314
        %v349 = vunpack.c.l.s4 1966171168
        %v350 = vunpack.c.0.s8 %v349
        %v351 = vlaneseq
        %v352 = vshrl.u32 %v351, 7
        %v353 = vsub.s32 %v350, %v352
        %v354 = vrot.slane %v347, %v353
        %v356 = vunpack.c.l.s4 1966171168
        %v357 = vunpack.c.0.s8 %v356
        %v358 = vlaneseq
        %v359 = vshrl.u32 %v358, 7
        %v360 = vsub.s32 %v357, %v359
        %v361 = vrot.slane %v354, %v360
        %v363 = vsel %vm343, %v361, 0.0
        %v364 = vadd.f32 %v344, %v363
        %v365 = vlaneseq
        %vm366 = vcmp.ge.s32.totalorder %v365, 0
        %vm367 = vcmp.lt.s32.totalorder %v365, 256
        %vm368 = vmand %vm366, %vm367
        %369 = vst.msk [vmem:[#allocation2] sm:$0x3] %vm368, %v364
        %v370 = vld [vmem:[#allocation3] sm:$0x3]
        %v371 = vsel %vm343, 1, 0
        %v372 = vcvt.s32.f32 %v371
        %v373 = vadd.f32 %v370, %v372
        %374 = vst.msk [vmem:[#allocation3] sm:$0x3] %vm368, %v373
        %p375 = scmp.eq.s32.totalorder %s21, 1
        %p376 = pnand %p375, %p218
        %p377 = pneg %p376
        // Predicated region
        $region33: #{non_saturating_loss_pallas.1} parent=27 // pred_check
          _
        $region34: #{non_saturating_loss_pallas.1} parent=27 // pred_check_branch
          %379 = sbr.rel (%p376) target = $region36
        $region35: #{non_saturating_loss_pallas.1} parent=27 // pred_region
          %v380 = vld [vmem:[#allocation2] sm:$0x3]
          %v382 = vlaneseq
          %v383 = vshrl.u32 %v382, 7
          %v384 = vsub.s32 0, %v383
          %v385 = vrot.slane %v380, %v384
          %v386 = vlaneseq
          %v387 = vshrl.u32 %v386, 7
          %v388 = vsub.s32 1, %v387
          %v389 = vrot.slane %v380, %v388
          %vm392 = vcmask 1040384
          %v393 = vsel %vm392, %v385, 0.0
          %v394 = vsel %vm392, %v389, 0.0
          %v395 = vadd.f32 %v393, %v394
          %396 = vadd.xlane.f32.xlu0 %v395
          %v397 = vpop.xlane.xlu0 %396
          %v398 = vrot.slane %v397, 4
          %v399 = vadd.f32 %v397, %v398
          %v400 = vrot.slane %v399, 2
          %v401 = vadd.f32 %v399, %v400
          %v402 = vrot.slane %v401, 1
          %v403 = vadd.f32 %v401, %v402
          %s404 = vtos %v403
          %v405 = vstv %s404
          %vm406 = vcmask 0
          %407 = vst.msk [vmem:[#allocation4] sm:$0x1] %vm406, %v405
          %v408 = vld [vmem:[#allocation3] sm:$0x3]
          %v410 = vlaneseq
          %v411 = vshrl.u32 %v410, 7
          %v412 = vsub.s32 0, %v411
          %v413 = vrot.slane %v408, %v412
          %v414 = vlaneseq
          %v415 = vshrl.u32 %v414, 7
          %v416 = vsub.s32 1, %v415
          %v417 = vrot.slane %v408, %v416
          %v420 = vsel %vm392, %v413, 0.0
          %v421 = vsel %vm392, %v417, 0.0
          %v422 = vadd.f32 %v420, %v421
          %423 = vadd.xlane.f32.xlu0 %v422
          %v424 = vpop.xlane.xlu0 %423
          %v425 = vrot.slane %v424, 4
          %v426 = vadd.f32 %v424, %v425
          %v427 = vrot.slane %v426, 2
          %v428 = vadd.f32 %v426, %v427
          %v429 = vrot.slane %v428, 1
          %v430 = vadd.f32 %v428, %v429
          %s431 = vtos %v430
          %v432 = vstv %s431
          %433 = vst.msk [vmem:[#allocation6] sm:$0x1] %vm406, %v432
        $region36: #{non_saturating_loss_pallas.1} parent=27 // pred_fallthru
          _
        // Predicated region
        $region37: #{non_saturating_loss_pallas.1} parent=27 // pred_check
          %p434 = pneg %p98
        $region38: #{non_saturating_loss_pallas.1} parent=27 // pred_check_branch
          %436 = sbr.rel (%p434) target = $region40
        $region39: #{non_saturating_loss_pallas.1} parent=27 // pred_region
          %s438 = ssub.s32 16, 16
          %439 = vsyncadd [#allocation5], %s438
          %s441 = sshll.u32 [#allocation4], 4
          %s442 = int_to_ptr.vmem [resolvable:$true] %s441
          %444 = dma.vmem_to_hbm [thread:$0]  %s442, 16, %s2, [#allocation5]
        $region40: #{non_saturating_loss_pallas.1} parent=27 // pred_fallthru
          _
        // Predicated region
        $region41: #{non_saturating_loss_pallas.1} parent=27 // pred_check
          %p445 = pneg %p119
        $region42: #{non_saturating_loss_pallas.1} parent=27 // pred_check_branch
          %447 = sbr.rel (%p445) target = $region44
        $region43: #{non_saturating_loss_pallas.1} parent=27 // pred_region
          %s449 = ssub.s32 16, 16
          %450 = vsyncadd [#allocation7], %s449
          %s452 = sshll.u32 [#allocation6], 4
          %s453 = int_to_ptr.vmem [resolvable:$true] %s452
          %455 = dma.vmem_to_hbm [thread:$0]  %s453, 16, %s3, [#allocation7]
        $region44: #{non_saturating_loss_pallas.1} parent=27 // pred_fallthru
          _
        // Predicated region
        $region45: #{non_saturating_loss_pallas.1} parent=27 // pred_check
          %p456 = pneg %p98
        $region46: #{non_saturating_loss_pallas.1} parent=27 // pred_check_branch
          %458 = sbr.rel (%p456) target = $region48
        $region47: #{non_saturating_loss_pallas.1} parent=27 // pred_region
          %459 = dma.done [#allocation5], 16
        $region48: #{non_saturating_loss_pallas.1} parent=27 // pred_fallthru
          _
        // Predicated region
        $region49: #{non_saturating_loss_pallas.1} parent=27 // pred_check
          %p460 = pneg %p119
        $region50: #{non_saturating_loss_pallas.1} parent=27 // pred_check_branch
          %462 = sbr.rel (%p460) target = $region52
        $region51: #{non_saturating_loss_pallas.1} parent=27 // pred_region
          %463 = dma.done [#allocation7], 16
        $region52: #{non_saturating_loss_pallas.1} parent=27 // pred_fallthru
          _
      $region28: #{non_saturating_loss_pallas.1} parent=5 // pred_fallthru
        _
      %p464 = scmp.le.s32.totalorder 2, %s12
      // Predicated region
      $region53: #{non_saturating_loss_pallas.1} parent=5 // pred_check
        %p465 = pneg %p464
      $region54: #{non_saturating_loss_pallas.1} parent=5 // pred_check_branch
        %467 = sbr.rel (%p465) target = $region56
      $region55: #{non_saturating_loss_pallas.1} parent=5 // pred_region
        %s468 = ssub.s32 %s12, 2
      $region56: #{non_saturating_loss_pallas.1} parent=5 // pred_fallthru
        _
    $region6: #{non_saturating_loss_pallas.1} parent=1 // loop_footer
      %s16 = sadd.s32 1, %s12
    $region7: #{non_saturating_loss_pallas.1} parent=1 // loop_footer_branch
      %11 = sbr.rel target = $region3
    $region8: #{non_saturating_loss_pallas.1} parent=1 // loop_exit
      _
    %469 = vsyncpa [#allocation5], 1
    %s470 = scalar_lea.sflag [#allocation5], 1
    %471 = vsyncpa %s470, 1
    %472 = vsyncpa [#allocation7], 1

</llo_original>
